<compile_context>
chip_gen: v7x
topology: tpu7x:2x2x1
jax: 0.10.0
libtpu: 0.0.40
codegen_flags: <defaults>
</compile_context>

<pallas_src>
import functools

import jax
import jax.numpy as jnp
from jax.experimental import pallas as pl
from jax.experimental.pallas import tpu as pltpu


def _ffn_kernel(x_ref, w1_ref, b1_ref, w2_ref, b2_ref, o_ref, acc_ref, *, approximate_gelu):
    # x_ref:  (tm, D_in_p)    bf16 tile of flattened tokens
    # w1_ref: (D_in_p, hc)    bf16 fc1 weight chunk (transposed vs torch)
    # b1_ref: (1, hc)         f32 fc1 bias chunk
    # w2_ref: (hc, D_out_p)   bf16 fc2 weight chunk (transposed vs torch)
    # b2_ref: (1, D_out_p)    f32 fc2 bias
    # o_ref:  (tm, D_out_p)   output tile (resident across the hidden-chunk axis)
    # acc_ref:(tm, D_out_p)   f32 accumulator scratch
    j = pl.program_id(1)

    @pl.when(j == 0)
    def _init():
        acc_ref[...] = jnp.zeros_like(acc_ref)

    h = jnp.dot(x_ref[...], w1_ref[...], preferred_element_type=jnp.float32)
    h = h + b1_ref[...]
    h = jax.nn.gelu(h, approximate=approximate_gelu)
    # Dropout with p=0.0 is identity -> no-op.
    acc_ref[...] += jnp.dot(
        h.astype(w2_ref.dtype), w2_ref[...], preferred_element_type=jnp.float32
    )

    @pl.when(j == pl.num_programs(1) - 1)
    def _finalize():
        o_ref[...] = (acc_ref[...] + b2_ref[...]).astype(o_ref.dtype)


def _round_up(x, m):
    return ((x + m - 1) // m) * m


def _spec(shape, index_map, single_buffered):
    """BlockSpec; single-buffer constant-index operands to halve resident weight VMEM."""
    if not single_buffered:
        return pl.BlockSpec(shape, index_map)
    try:
        return pl.BlockSpec(shape, index_map, pipeline_mode=pl.Buffered(1))
    except (TypeError, AttributeError, ValueError):
        # Older JAX without pipeline_mode support: fall back to default double-buffering.
        return pl.BlockSpec(shape, index_map)


@functools.lru_cache(maxsize=1)
def _physical_vmem_bytes():
    """Per-TensorCore VMEM capacity; conservative 64 MiB fallback (v7x-sized)."""
    try:
        info = pltpu.get_tpu_info()
        v = int(getattr(info, "vmem_capacity_bytes", 0))
        if v > 0:
            return v
    except Exception:
        pass
    return 64 * 2**20


@functools.partial(
    jax.jit, static_argnames=("tm", "hc", "compute_dtype", "approximate_gelu")
)
def ffn_pallas(x, w1, b1, w2, b2, *, tm=None, hc=None,
               compute_dtype=jnp.bfloat16, approximate_gelu=True):
    """x: (B, N, D_in) channels-last. Returns (B, N, D_out) in x.dtype."""
    B, N, D_in = x.shape
    H = w1.shape[1]
    D_out = w2.shape[1]
    M = B * N

    out_dtype = x.dtype
    a_item = jnp.dtype(compute_dtype).itemsize        # activation (x tile) bytes/elem
    w_item = jnp.dtype(compute_dtype).itemsize        # weight bytes/elem
    o_item = jnp.dtype(out_dtype).itemsize
    sub = 16 if a_item < 4 else 8                      # bf16 sublane packing -> 16

    # ---- generation-aware VMEM budget & default tiling ----
    vmem_phys = _physical_vmem_bytes()
    vmem_cap = min(vmem_phys - 8 * 2**20, 100 * 2**20)  # ~56 MiB on v7x, ~100 MiB on v5e/v6e
    if tm is None:
        tm = 512 if vmem_phys >= 100 * 2**20 else 256
    if hc is None:
        hc = 1024 if vmem_phys >= 100 * 2**20 else 512

    # ---- TPU-friendly padded shapes (zero padding is an exact no-op here) ----
    d_in_p = _round_up(D_in, 128)                      # lane-dense feature dims
    d_out_p = _round_up(D_out, 128)
    h_128 = _round_up(H, 128)

    tm = max(sub, min(_round_up(tm, sub), _round_up(M, sub)))
    hc = _round_up(min(hc, h_128), 128)

    # Keep the full (padded) weights resident when they are small: weight HBM traffic
    # is then paid once instead of once per token tile (n_m times).
    w_all_bytes = (d_in_p * h_128 + h_128 * d_out_p) * w_item
    if w_all_bytes <= min(vmem_cap // 3, 24 * 2**20):
        hc = h_128

    def _estimate(tm_, hc_, n_h_):
        w_bufs_ = 1 if n_h_ == 1 else 2
        wbytes = w_bufs_ * ((d_in_p * hc_ + hc_ * d_out_p) * w_item + (hc_ + d_out_p) * 4)
        abytes = 2 * tm_ * (d_in_p * a_item + d_out_p * o_item)   # double-buffered x / out
        sbytes = tm_ * d_out_p * 4 + 2 * tm_ * hc_ * 4            # f32 acc + GELU intermediate
        return wbytes + abytes + sbytes

    # Shrink hc (then tm) until the estimated resident set fits the physical budget.
    for _ in range(8):
        h_pad = _round_up(h_128, hc)
        n_h = h_pad // hc
        if 1.25 * _estimate(tm, hc, n_h) <= vmem_cap:
            break
        if hc > 256:
            hc = _round_up(hc // 2, 128)
        elif tm > 8 * sub:
            tm = _round_up(tm // 2, sub)
        else:
            break

    h_pad = _round_up(h_128, hc)
    n_h = h_pad // hc
    m_pad = _round_up(M, tm)
    n_m = m_pad // tm
    single_w = n_h == 1  # constant index_map -> never re-fetched; 1 buffer saves VMEM
    # NOTE: for best v7x megacore balance n_m should be >= 2 and even; with the default
    # tm this holds for realistic M, and small M is latency-trivial anyway.

    vmem_limit = int(min(max(1.25 * _estimate(tm, hc, n_h), 16 * 2**20), vmem_cap))

    # ---- pad inputs only when needed (fast path skips the extra HBM copies) ----
    x2 = x.reshape(M, D_in).astype(compute_dtype)
    if m_pad != M or d_in_p != D_in:
        x2 = jnp.pad(x2, ((0, m_pad - M), (0, d_in_p - D_in)))
    w1p = w1.astype(compute_dtype)
    if d_in_p != D_in or h_pad != H:
        w1p = jnp.pad(w1p, ((0, d_in_p - D_in), (0, h_pad - H)))
    w2p = w2.astype(compute_dtype)
    if h_pad != H or d_out_p != D_out:
        w2p = jnp.pad(w2p, ((0, h_pad - H), (0, d_out_p - D_out)))
    b1p = b1.astype(jnp.float32).reshape(1, H)
    if h_pad != H:
        b1p = jnp.pad(b1p, ((0, 0), (0, h_pad - H)))
    b2p = b2.astype(jnp.float32).reshape(1, D_out)
    if d_out_p != D_out:
        b2p = jnp.pad(b2p, ((0, 0), (0, d_out_p - D_out)))
    # Padded W1/b1 columns are zero -> GELU(0) = 0, and padded W2 rows/cols are zero,
    # so padding contributes exactly 0 to the (sliced) output.

    # ---- advisory cost estimate (includes the n_m x weight re-stream term) ----
    cost = pl.CostEstimate(
        flops=2 * M * (D_in * H + H * D_out),
        transcendentals=M * H,  # GELU
        bytes_accessed=(
            m_pad * d_in_p * a_item
            + m_pad * d_out_p * o_item
            + n_m * (d_in_p * h_pad + h_pad * d_out_p) * w_item
            + (h_pad + d_out_p) * 4
        ),
    )

    out_p = pl.pallas_call(
        functools.partial(_ffn_kernel, approximate_gelu=approximate_gelu),
        out_shape=jax.ShapeDtypeStruct((m_pad, d_out_p), out_dtype),
        grid_spec=pltpu.PrefetchScalarGridSpec(
            num_scalar_prefetch=0,
            grid=(n_m, n_h),
            in_specs=[
                pl.BlockSpec((tm, d_in_p), lambda i, j: (i, 0)),
                _spec((d_in_p, hc), lambda i, j: (0, j), single_w),
                _spec((1, hc), lambda i, j: (0, j), single_w),
                _spec((hc, d_out_p), lambda i, j: (j, 0), single_w),
                _spec((1, d_out_p), lambda i, j: (0, 0), True),
            ],
            out_specs=pl.BlockSpec((tm, d_out_p), lambda i, j: (i, 0)),
            scratch_shapes=[pltpu.VMEM((tm, d_out_p), jnp.float32)],
        ),
        compiler_params=pltpu.CompilerParams(
            dimension_semantics=("parallel", "arbitrary"),
            vmem_limit_bytes=vmem_limit,
        ),
        cost_estimate=cost,
    )(x2, w1p, b1p, w2p, b2p)

    if m_pad == M and d_out_p == D_out:
        return out_p.reshape(B, N, D_out)
    return out_p[:M, :D_out].reshape(B, N, D_out)


def ffn_reference(x, w1, b1, w2, b2, approximate_gelu=True):
    h = jnp.dot(x, w1) + b1
    h = jax.nn.gelu(h, approximate=approximate_gelu)
    y = jnp.dot(h, w2) + b2
    return y


if __name__ == "__main__":
    key = jax.random.PRNGKey(0)
    B, N = 2, 8                       # batch, sequence
    D_in, Hdim, D_out = 32, 64, 32    # in_features, hidden_features, out_features

    k_x, k_w1, k_b1, k_w2, k_b2 = jax.random.split(key, 5)
    x = jax.random.normal(k_x, (B, N, D_in), dtype=jnp.float32)
    # Deterministic synthetic parameters (shapes per nn.Linear in the module, transposed).
    w1 = jax.random.normal(k_w1, (D_in, Hdim), dtype=jnp.float32) * 0.05
    b1 = jax.random.normal(k_b1, (Hdim,), dtype=jnp.float32) * 0.05
    w2 = jax.random.normal(k_w2, (Hdim, D_out), dtype=jnp.float32) * 0.05
    b2 = jax.random.normal(k_b2, (D_out,), dtype=jnp.float32) * 0.05

    out = ffn_pallas(x, w1, b1, w2, b2)
    out = jax.block_until_ready(out)

    ref = ffn_reference(x, w1, b1, w2, b2, approximate_gelu=True)
    assert out.shape == (B, N, D_out)
    # bf16 MXU datapath with f32 accumulation -> relaxed tolerance vs the f32 reference.
    assert jnp.allclose(out, ref, atol=2e-2, rtol=2e-2), "mismatch vs reference"

    print("KERNEL_OK")
</pallas_src>

<mosaic_0001>
module attributes {stable_mosaic.version = 11 : i64} {
  func.func @_ffn_kernel(%arg0: i32, %arg1: i32, %arg2: memref<16x128xbf16, #tpu.memory_space<vmem>>, %arg3: memref<128x128xbf16, #tpu.memory_space<vmem>>, %arg4: memref<1x128xf32, #tpu.memory_space<vmem>>, %arg5: memref<128x128xbf16, #tpu.memory_space<vmem>>, %arg6: memref<1x128xf32, #tpu.memory_space<vmem>>, %arg7: memref<16x128xf32, #tpu.memory_space<vmem>>, %arg8: memref<16x128xf32, #tpu.memory_space<vmem>>) attributes {dimension_semantics = [#tpu.dimension_semantics<parallel>, #tpu.dimension_semantics<arbitrary>], iteration_bounds = array<i64: 1, 1>, scalar_prefetch = 0 : i64, scratch_operands = 1 : i64, tpu.core_type = #tpu.core_type<tc>, window_params = [{transform_indices = @transform_0, window_bounds = array<i64: 16, 128>}, {pipeline_mode = #tpu.pipeline_mode<synchronous>, transform_indices = @transform_1, window_bounds = array<i64: 128, 128>}, {pipeline_mode = #tpu.pipeline_mode<synchronous>, transform_indices = @transform_2, window_bounds = array<i64: 1, 128>}, {pipeline_mode = #tpu.pipeline_mode<synchronous>, transform_indices = @transform_3, window_bounds = array<i64: 128, 128>}, {pipeline_mode = #tpu.pipeline_mode<synchronous>, transform_indices = @transform_4, window_bounds = array<i64: 1, 128>}, {transform_indices = @transform_5, window_bounds = array<i64: 16, 128>}]} {
    %c0_i32 = arith.constant 0 : i32
    %0 = arith.cmpi eq, %arg1, %c0_i32 : i32
    %1 = arith.extui %0 : i1 to i32
    %c0_i32_0 = arith.constant 0 : i32
    %2 = arith.cmpi ne, %1, %c0_i32_0 : i32
    scf.if %2 {
      %cst_19 = arith.constant 0.000000e+00 : f32
      %31 = vector.broadcast %cst_19 : f32 to vector<16x128xf32>
      %c0_20 = arith.constant 0 : index
      %c0_21 = arith.constant 0 : index
      %32 = vector.load %arg8[%c0_20, %c0_21] : memref<16x128xf32, #tpu.memory_space<vmem>>, vector<16x128xf32>
      tpu.vector_store %arg8[%c0_20, %c0_21], %31 {strides = array<i32>} : memref<16x128xf32, #tpu.memory_space<vmem>>, vector<16x128xf32>,
    } else {
    }
    %c0 = arith.constant 0 : index
    %c0_1 = arith.constant 0 : index
    %3 = vector.load %arg2[%c0, %c0_1] : memref<16x128xbf16, #tpu.memory_space<vmem>>, vector<16x128xbf16>
    %c0_2 = arith.constant 0 : index
    %c0_3 = arith.constant 0 : index
    %4 = vector.load %arg3[%c0_2, %c0_3] : memref<128x128xbf16, #tpu.memory_space<vmem>>, vector<128x128xbf16>
    %cst = arith.constant dense<0.000000e+00> : vector<16x128xf32>
    %5 = tpu.matmul %3, %4, %cst {dimension_numbers = #tpu.dot_dimension_numbers<[1], [0], [0], [1], [0, 0, 1, 1], [], []>} : vector<16x128xbf16>, vector<128x128xbf16>, vector<16x128xf32> -> vector<16x128xf32>
    %c0_4 = arith.constant 0 : index
    %c0_5 = arith.constant 0 : index
    %6 = vector.load %arg4[%c0_4, %c0_5] : memref<1x128xf32, #tpu.memory_space<vmem>>, vector<1x128xf32>
    %7 = vector.broadcast %6 : vector<1x128xf32> to vector<16x128xf32>
    %8 = arith.addf %5, %7 : vector<16x128xf32>
    %9 = arith.mulf %8, %8 : vector<16x128xf32>
    %10 = arith.mulf %8, %9 : vector<16x128xf32>
    %cst_6 = arith.constant 4.471500e-02 : f32
    %11 = vector.broadcast %cst_6 : f32 to vector<16x128xf32>
    %12 = arith.mulf %11, %10 : vector<16x128xf32>
    %13 = arith.addf %8, %12 : vector<16x128xf32>
    %cst_7 = arith.constant 0.797884583 : f32
    %14 = vector.broadcast %cst_7 : f32 to vector<16x128xf32>
    %15 = arith.mulf %14, %13 : vector<16x128xf32>
    %16 = math.tanh %15 : vector<16x128xf32>
    %cst_8 = arith.constant 1.000000e+00 : f32
    %17 = vector.broadcast %cst_8 : f32 to vector<16x128xf32>
    %18 = arith.addf %17, %16 : vector<16x128xf32>
    %cst_9 = arith.constant 5.000000e-01 : f32
    %19 = vector.broadcast %cst_9 : f32 to vector<16x128xf32>
    %20 = arith.mulf %19, %18 : vector<16x128xf32>
    %21 = arith.mulf %8, %20 : vector<16x128xf32>
    %c0_10 = arith.constant 0 : index
    %c0_11 = arith.constant 0 : index
    %22 = vector.load %arg8[%c0_10, %c0_11] : memref<16x128xf32, #tpu.memory_space<vmem>>, vector<16x128xf32>
    %23 = arith.truncf %21 : vector<16x128xf32> to vector<16x128xbf16>
    %c0_12 = arith.constant 0 : index
    %c0_13 = arith.constant 0 : index
    %24 = vector.load %arg5[%c0_12, %c0_13] : memref<128x128xbf16, #tpu.memory_space<vmem>>, vector<128x128xbf16>
    %cst_14 = arith.constant dense<0.000000e+00> : vector<16x128xf32>
    %25 = tpu.matmul %23, %24, %cst_14 {dimension_numbers = #tpu.dot_dimension_numbers<[1], [0], [0], [1], [0, 0, 1, 1], [], []>} : vector<16x128xbf16>, vector<128x128xbf16>, vector<16x128xf32> -> vector<16x128xf32>
    %26 = arith.addf %22, %25 : vector<16x128xf32>
    %c0_15 = arith.constant 0 : index
    %c0_16 = arith.constant 0 : index
    %27 = vector.load %arg8[%c0_15, %c0_16] : memref<16x128xf32, #tpu.memory_space<vmem>>, vector<16x128xf32>
    tpu.vector_store %arg8[%c0_15, %c0_16], %26 {strides = array<i32>} : memref<16x128xf32, #tpu.memory_space<vmem>>, vector<16x128xf32>,
    %c0_i32_17 = arith.constant 0 : i32
    %28 = arith.cmpi eq, %arg1, %c0_i32_17 : i32
    %29 = arith.extui %28 : i1 to i32
    %c0_i32_18 = arith.constant 0 : i32
    %30 = arith.cmpi ne, %29, %c0_i32_18 : i32
    scf.if %30 {
      %c0_19 = arith.constant 0 : index
      %c0_20 = arith.constant 0 : index
      %31 = vector.load %arg8[%c0_19, %c0_20] : memref<16x128xf32, #tpu.memory_space<vmem>>, vector<16x128xf32>
      %c0_21 = arith.constant 0 : index
      %c0_22 = arith.constant 0 : index
      %32 = vector.load %arg6[%c0_21, %c0_22] : memref<1x128xf32, #tpu.memory_space<vmem>>, vector<1x128xf32>
      %33 = vector.broadcast %32 : vector<1x128xf32> to vector<16x128xf32>
      %34 = arith.addf %31, %33 : vector<16x128xf32>
      %c0_23 = arith.constant 0 : index
      %c0_24 = arith.constant 0 : index
      %35 = vector.load %arg7[%c0_23, %c0_24] : memref<16x128xf32, #tpu.memory_space<vmem>>, vector<16x128xf32>
      tpu.vector_store %arg7[%c0_23, %c0_24], %34 {strides = array<i32>} : memref<16x128xf32, #tpu.memory_space<vmem>>, vector<16x128xf32>,
    } else {
    }
    return
  }
  func.func @transform_0(%arg0: i32, %arg1: i32) -> (i32, i32) {
    %c0_i32 = arith.constant 0 : i32
    %c0_i32_0 = arith.constant 0 : i32
    return %arg0, %c0_i32 : i32, i32
  }
  func.func @transform_1(%arg0: i32, %arg1: i32) -> (i32, i32) {
    %c0_i32 = arith.constant 0 : i32
    %c0_i32_0 = arith.constant 0 : i32
    return %c0_i32, %arg1 : i32, i32
  }
  func.func @transform_2(%arg0: i32, %arg1: i32) -> (i32, i32) {
    %c0_i32 = arith.constant 0 : i32
    %c0_i32_0 = arith.constant 0 : i32
    return %c0_i32, %arg1 : i32, i32
  }
  func.func @transform_3(%arg0: i32, %arg1: i32) -> (i32, i32) {
    %c0_i32 = arith.constant 0 : i32
    %c0_i32_0 = arith.constant 0 : i32
    return %arg1, %c0_i32 : i32, i32
  }
  func.func @transform_4(%arg0: i32, %arg1: i32) -> (i32, i32) {
    %c0_i32 = arith.constant 0 : i32
    %c0_i32_0 = arith.constant 0 : i32
    %c0_i32_1 = arith.constant 0 : i32
    return %c0_i32, %c0_i32_0 : i32, i32
  }
  func.func @transform_5(%arg0: i32, %arg1: i32) -> (i32, i32) {
    %c0_i32 = arith.constant 0 : i32
    %c0_i32_0 = arith.constant 0 : i32
    return %arg0, %c0_i32 : i32, i32
  }
}

</mosaic_0001>

<llo_original>
// kernel: ffn_pallas.1
$region0: #{ffn_pallas.1}
  #allocation0 [shape = 'u32[]', space=smem, size = 0x4, offset = 0x4, fixed_abs, tag = 'smem constant byte address 0x4 - core index']
  #allocation1 [shape = 'u32[144,128]{1,0:T(1,128)}', space=vmem, size = 0x12000, scoped, tag = 'internal scratch']
  #allocation2 [shape = 'f32[16,128]{1,0:T(8,128)}', space=vmem, size = 0x2000, scoped, tag = 'scratch operand']
  %s0 = inlined_call_operand.vmem [shape: bf16[16,128], index: 0, kind: input, shape index: {}]
  %s1 = inlined_call_operand.vmem [shape: bf16[128,128], index: 1, kind: input, shape index: {}]
  %s2 = inlined_call_operand.vmem [shape: f32[1,128], index: 2, kind: input, shape index: {}]
  %s3 = inlined_call_operand.vmem [shape: bf16[128,128], index: 3, kind: input, shape index: {}]
  %s4 = inlined_call_operand.vmem [shape: f32[1,128], index: 4, kind: input, shape index: {}]
  %s5 = inlined_call_operand.vmem [shape: f32[16,128], index: 5, kind: output, shape index: {}]
  %s6 = sld [smem:[#allocation0]]
  $region38: #{ffn_pallas.1} parent=0
    _
  %s8 = ssub.s32 1, %s6
  %s9 = scalar_select 0, %s8, %s6
  // Predicated region
  $region2: #{ffn_pallas.1} parent=0 // pred_check
    _
  $region3: #{ffn_pallas.1} parent=0 // pred_check_branch
    %11 = sbr.rel (0) target = $region5
  $region4: #{ffn_pallas.1} parent=0 // pred_region
    _
  $region5: #{ffn_pallas.1} parent=0 // pred_fallthru
    _
  // Predicated region
  $region6: #{ffn_pallas.1} parent=0 // pred_check
    _
  $region7: #{ffn_pallas.1} parent=0 // pred_check_branch
    %13 = sbr.rel (0) target = $region9
  $region8: #{ffn_pallas.1} parent=0 // pred_region
    _
  $region9: #{ffn_pallas.1} parent=0 // pred_fallthru
    _
  // Predicated region
  $region10: #{ffn_pallas.1} parent=0 // pred_check
    _
  $region11: #{ffn_pallas.1} parent=0 // pred_check_branch
    %15 = sbr.rel (0) target = $region13
  $region12: #{ffn_pallas.1} parent=0 // pred_region
    _
  $region13: #{ffn_pallas.1} parent=0 // pred_fallthru
    _
  // Predicated region
  $region14: #{ffn_pallas.1} parent=0 // pred_check
    _
  $region15: #{ffn_pallas.1} parent=0 // pred_check_branch
    %17 = sbr.rel (0) target = $region17
  $region16: #{ffn_pallas.1} parent=0 // pred_region
    _
  $region17: #{ffn_pallas.1} parent=0 // pred_fallthru
    _
  // Predicated region
  $region18: #{ffn_pallas.1} parent=0 // pred_check
    _
  $region19: #{ffn_pallas.1} parent=0 // pred_check_branch
    %19 = sbr.rel (0) target = $region21
  $region20: #{ffn_pallas.1} parent=0 // pred_region
    _
  $region21: #{ffn_pallas.1} parent=0 // pred_fallthru
    _
  %p21 = scmp.eq.s32.totalorder 0, 0
  // Predicated region
  $region22: #{ffn_pallas.1} parent=0 // pred_check
    %p22 = pneg %p21
  $region23: #{ffn_pallas.1} parent=0 // pred_check_branch
    %24 = sbr.rel (%p22) target = $region25
  $region24: #{ffn_pallas.1} parent=0 // pred_region
    %25 = vst [vmem:[#allocation2] sm:$0xff] 0.0
    %26 = vst [vmem:[#allocation2 + $0x8] sm:$0xff] 0.0
  $region25: #{ffn_pallas.1} parent=0 // pred_fallthru
    _
  %v27 = vld [vmem:[%s0] sm:$0xf]
  %v28 = vld [vmem:[%s0 + $0x4] sm:$0xf]
  %v29 = vld [vmem:[%s1] sm:$0xf]
  %v30 = vld [vmem:[%s1 + $0x4] sm:$0xf]
  %v31 = vld [vmem:[%s1 + $0x8] sm:$0xf]
  %v32 = vld [vmem:[%s1 + $0xc] sm:$0xf]
  %v33 = vld [vmem:[%s1 + $0x10] sm:$0xf]
  %v34 = vld [vmem:[%s1 + $0x14] sm:$0xf]
  %v35 = vld [vmem:[%s1 + $0x18] sm:$0xf]
  %v36 = vld [vmem:[%s1 + $0x1c] sm:$0xf]
  %v37 = vld [vmem:[%s1 + $0x20] sm:$0xf]
  %v38 = vld [vmem:[%s1 + $0x24] sm:$0xf]
  %v39 = vld [vmem:[%s1 + $0x28] sm:$0xf]
  %v40 = vld [vmem:[%s1 + $0x2c] sm:$0xf]
  %v41 = vld [vmem:[%s1 + $0x30] sm:$0xf]
  %v42 = vld [vmem:[%s1 + $0x34] sm:$0xf]
  %v43 = vld [vmem:[%s1 + $0x38] sm:$0xf]
  %v44 = vld [vmem:[%s1 + $0x3c] sm:$0xf]
  %v45 = vld [vmem:[%s2] sm:$0x1]
  %v47 = vlaneseq
  %v48 = vshrl.u32 %v47, 7
  %v49 = vsub.s32 0, %v48
  %v50 = vrot.slane %v45, %v49
  %v54 = vunpack.c.l.b16 %v27
  %v55 = vunpack.c.l.b16 %v28
  %v56 = vpack.c.b16 %v55, %v54
  %v74 = vunpack.c.l.b16 %v29
  %v75 = vunpack.c.l.b16 %v30
  %v76 = vunpack.c.l.b16 %v31
  %v77 = vunpack.c.l.b16 %v32
  %v78 = vunpack.c.l.b16 %v33
  %v79 = vunpack.c.l.b16 %v34
  %v80 = vunpack.c.l.b16 %v35
  %v81 = vunpack.c.l.b16 %v36
  %v82 = vunpack.c.l.b16 %v37
  %v83 = vunpack.c.l.b16 %v38
  %v84 = vunpack.c.l.b16 %v39
  %v85 = vunpack.c.l.b16 %v40
  %v86 = vunpack.c.l.b16 %v41
  %v87 = vunpack.c.l.b16 %v42
  %v88 = vunpack.c.l.b16 %v43
  %v89 = vunpack.c.l.b16 %v44
  %v90 = vpack.c.b16 %v75, %v74
  %v91 = vpack.c.b16 %v77, %v76
  %v92 = vpack.c.b16 %v79, %v78
  %v93 = vpack.c.b16 %v81, %v80
  %v94 = vpack.c.b16 %v83, %v82
  %v95 = vpack.c.b16 %v85, %v84
  %v96 = vpack.c.b16 %v87, %v86
  %v97 = vpack.c.b16 %v89, %v88
  %106 = vmatprep.subr.bf16.mxu0 0
  %107 = vmatpush1.bf16.msra.mxu0 %v90
  %108 = vmatprep.subr.bf16.mxu0 0
  %109 = vmatpush1.bf16.msra.mxu0 %v91
  %110 = vmatprep.subr.bf16.mxu0 0
  %111 = vmatpush1.bf16.msra.mxu0 %v92
  %112 = vmatprep.subr.bf16.mxu0 0
  %113 = vmatpush1.bf16.msra.mxu0 %v93
  %114 = vmatprep.subr.bf16.mxu0 0
  %115 = vmatpush1.bf16.msra.mxu0 %v94
  %116 = vmatprep.subr.bf16.mxu0 0
  %117 = vmatpush1.bf16.msra.mxu0 %v95
  %118 = vmatprep.subr.bf16.mxu0 0
  %119 = vmatpush1.bf16.msra.mxu0 %v96
  %120 = vmatprep.subr.bf16.mxu0 0
  %121 = vmatpush1.bf16.msra.mxu0 %v97
  %122 = vmatprep.subr.bf16.mxu0 0
  %123 = vmatpush1.bf16.msra.mxu0 0
  %124 = vmatprep.subr.bf16.mxu0 0
  %125 = vmatpush1.bf16.msra.mxu0 0
  %126 = vmatprep.subr.bf16.mxu0 0
  %127 = vmatpush1.bf16.msra.mxu0 0
  %128 = vmatprep.subr.bf16.mxu0 0
  %129 = vmatpush1.bf16.msra.mxu0 0
  %130 = vmatprep.subr.bf16.mxu0 0
  %131 = vmatpush1.bf16.msra.mxu0 0
  %132 = vmatprep.subr.bf16.mxu0 0
  %133 = vmatpush1.bf16.msra.mxu0 0
  %134 = vmatprep.subr.bf16.mxu0 0
  %135 = vmatpush1.bf16.msra.mxu0 0
  %136 = vmatprep.subr.bf16.mxu0 0
  %137 = vmatpush1.bf16.msra.mxu0 0
  %138 = vmatprep.mubr.bf16.mxu0 0
  %139 = vmatmul.mubr.bf16.gmra.mrb[0].mxu0 %v56
  %v140 = vpop.f32.mrb[0].mxu0
  %v141 = vadd.f32 %v50, %v140
  %v142 = vpop.f32.mrb[0].mxu0
  %v143 = vpop.f32.mrb[0].mxu0
  %v144 = vadd.f32 %v50, %v143
  %v145 = vpop.f32.mrb[0].mxu0
  %146 = vdwg.mxu0
  %v147 = vmul.f32 %v141, %v141
  %v148 = vmul.f32 %v144, %v144
  %v149 = vmul.f32 %v141, %v147
  %v150 = vmul.f32 %v144, %v148
  %v151 = vmul.f32 %v149, 0.044715
  %v152 = vmul.f32 %v150, 0.044715
  %v153 = vadd.f32 %v141, %v151
  %v154 = vadd.f32 %v144, %v152
  %v155 = vmul.f32 %v153, 0.7978846
  %v156 = vmul.f32 %v154, 0.7978846
  %v157 = vtanh.pop %v155
  %v158 = vtanh.pop %v156
  %v159 = vadd.f32 %v157, 1.0
  %v160 = vadd.f32 %v158, 1.0
  %v161 = vmul.f32 %v159, 0.5
  %v162 = vmul.f32 %v160, 0.5
  %v163 = vmul.f32 %v141, %v161
  %v164 = vmul.f32 %v144, %v162
  %v165 = vld [vmem:[#allocation2] sm:$0xff]
  %v166 = vld [vmem:[#allocation2 + $0x8] sm:$0xff]
  %v167 = vpack.c.bf16 %v164, %v163
  %v168 = vld [vmem:[%s3] sm:$0xf]
  %v169 = vld [vmem:[%s3 + $0x4] sm:$0xf]
  %v170 = vld [vmem:[%s3 + $0x8] sm:$0xf]
  %v171 = vld [vmem:[%s3 + $0xc] sm:$0xf]
  %v172 = vld [vmem:[%s3 + $0x10] sm:$0xf]
  %v173 = vld [vmem:[%s3 + $0x14] sm:$0xf]
  %v174 = vld [vmem:[%s3 + $0x18] sm:$0xf]
  %v175 = vld [vmem:[%s3 + $0x1c] sm:$0xf]
  %v176 = vld [vmem:[%s3 + $0x20] sm:$0xf]
  %v177 = vld [vmem:[%s3 + $0x24] sm:$0xf]
  %v178 = vld [vmem:[%s3 + $0x28] sm:$0xf]
  %v179 = vld [vmem:[%s3 + $0x2c] sm:$0xf]
  %v180 = vld [vmem:[%s3 + $0x30] sm:$0xf]
  %v181 = vld [vmem:[%s3 + $0x34] sm:$0xf]
  %v182 = vld [vmem:[%s3 + $0x38] sm:$0xf]
  %v183 = vld [vmem:[%s3 + $0x3c] sm:$0xf]
  %v200 = vunpack.c.l.b16 %v168
  %v201 = vunpack.c.l.b16 %v169
  %v202 = vunpack.c.l.b16 %v170
  %v203 = vunpack.c.l.b16 %v171
  %v204 = vunpack.c.l.b16 %v172
  %v205 = vunpack.c.l.b16 %v173
  %v206 = vunpack.c.l.b16 %v174
  %v207 = vunpack.c.l.b16 %v175
  %v208 = vunpack.c.l.b16 %v176
  %v209 = vunpack.c.l.b16 %v177
  %v210 = vunpack.c.l.b16 %v178
  %v211 = vunpack.c.l.b16 %v179
  %v212 = vunpack.c.l.b16 %v180
  %v213 = vunpack.c.l.b16 %v181
  %v214 = vunpack.c.l.b16 %v182
  %v215 = vunpack.c.l.b16 %v183
  %v216 = vpack.c.b16 %v201, %v200
  %v217 = vpack.c.b16 %v203, %v202
  %v218 = vpack.c.b16 %v205, %v204
  %v219 = vpack.c.b16 %v207, %v206
  %v220 = vpack.c.b16 %v209, %v208
  %v221 = vpack.c.b16 %v211, %v210
  %v222 = vpack.c.b16 %v213, %v212
  %v223 = vpack.c.b16 %v215, %v214
  %232 = vmatprep.subr.bf16.mxu0 0
  %233 = vmatpush1.bf16.msra.mxu0 %v216
  %234 = vmatprep.subr.bf16.mxu0 0
  %235 = vmatpush1.bf16.msra.mxu0 %v217
  %236 = vmatprep.subr.bf16.mxu0 0
  %237 = vmatpush1.bf16.msra.mxu0 %v218
  %238 = vmatprep.subr.bf16.mxu0 0
  %239 = vmatpush1.bf16.msra.mxu0 %v219
  %240 = vmatprep.subr.bf16.mxu0 0
  %241 = vmatpush1.bf16.msra.mxu0 %v220
  %242 = vmatprep.subr.bf16.mxu0 0
  %243 = vmatpush1.bf16.msra.mxu0 %v221
  %244 = vmatprep.subr.bf16.mxu0 0
  %245 = vmatpush1.bf16.msra.mxu0 %v222
  %246 = vmatprep.subr.bf16.mxu0 0
  %247 = vmatpush1.bf16.msra.mxu0 %v223
  %248 = vmatprep.subr.bf16.mxu0 0
  %249 = vmatpush1.bf16.msra.mxu0 0
  %250 = vmatprep.subr.bf16.mxu0 0
  %251 = vmatpush1.bf16.msra.mxu0 0
  %252 = vmatprep.subr.bf16.mxu0 0
  %253 = vmatpush1.bf16.msra.mxu0 0
  %254 = vmatprep.subr.bf16.mxu0 0
  %255 = vmatpush1.bf16.msra.mxu0 0
  %256 = vmatprep.subr.bf16.mxu0 0
  %257 = vmatpush1.bf16.msra.mxu0 0
  %258 = vmatprep.subr.bf16.mxu0 0
  %259 = vmatpush1.bf16.msra.mxu0 0
  %260 = vmatprep.subr.bf16.mxu0 0
  %261 = vmatpush1.bf16.msra.mxu0 0
  %262 = vmatprep.subr.bf16.mxu0 0
  %263 = vmatpush1.bf16.msra.mxu0 0
  %264 = vmatprep.mubr.bf16.mxu0 0
  %265 = vmatmul.mubr.bf16.gmra.mrb[0].mxu0 %v167
  %v266 = vpop.f32.mrb[0].mxu0
  %v267 = vadd.f32 0.0, %v266
  %v268 = vpop.f32.mrb[0].mxu0
  %v269 = vpop.f32.mrb[0].mxu0
  %v270 = vadd.f32 0.0, %v269
  %v271 = vpop.f32.mrb[0].mxu0
  %272 = vdwg.mxu0
  %v273 = vadd.f32 %v165, %v267
  %v274 = vadd.f32 %v166, %v270
  %275 = vst [vmem:[#allocation2] sm:$0xff] %v273
  %276 = vst [vmem:[#allocation2 + $0x8] sm:$0xff] %v274
  // Predicated region
  $region26: #{ffn_pallas.1} parent=0 // pred_check
    %p277 = pneg %p21
  $region27: #{ffn_pallas.1} parent=0 // pred_check_branch
    %279 = sbr.rel (%p277) target = $region29
  $region28: #{ffn_pallas.1} parent=0 // pred_region
    %v280 = vld [vmem:[#allocation2] sm:$0xff]
    %v281 = vld [vmem:[#allocation2 + $0x8] sm:$0xff]
    %v282 = vld [vmem:[%s4] sm:$0x1]
    %v284 = vlaneseq
    %v285 = vshrl.u32 %v284, 7
    %v286 = vsub.s32 0, %v285
    %v287 = vrot.slane %v282, %v286
    %v289 = vadd.f32 %v280, %v287
    %v290 = vadd.f32 %v281, %v287
    %291 = vst [vmem:[%s5] sm:$0xff] %v289
    %292 = vst [vmem:[%s5 + $0x8] sm:$0xff] %v290
  $region29: #{ffn_pallas.1} parent=0 // pred_fallthru
    _
  // Predicated region
  $region30: #{ffn_pallas.1} parent=0 // pred_check
    _
  $region31: #{ffn_pallas.1} parent=0 // pred_check_branch
    %294 = sbr.rel (0) target = $region33
  $region32: #{ffn_pallas.1} parent=0 // pred_region
    _
  $region33: #{ffn_pallas.1} parent=0 // pred_fallthru
    _
  // Predicated region
  $region34: #{ffn_pallas.1} parent=0 // pred_check
    _
  $region35: #{ffn_pallas.1} parent=0 // pred_check_branch
    %296 = sbr.rel (0) target = $region37
  $region36: #{ffn_pallas.1} parent=0 // pred_region
    _
  $region37: #{ffn_pallas.1} parent=0 // pred_fallthru
    _

</llo_original>
